<compile_context>
chip_gen: v7x
topology: tpu7x:2x2x1
jax: 0.10.0
libtpu: 0.0.40
codegen_flags: <defaults>
</compile_context>

<pallas_src>
import jax
import jax.numpy as jnp
from jax import lax
from jax.experimental import pallas as pl
from jax.experimental.pallas import tpu as pltpu


def _linear_kernel(x_ref, w_ref, o_ref):
    # x_ref: (tm, K), w_ref: (N, K)  ->  o_ref: (tm, N) = x @ W.T
    # Contract K of x with K of W directly (no transposed copy of W); the MXU
    # consumes the transposed operand natively.
    o_ref[...] = lax.dot_general(
        x_ref[...],
        w_ref[...],
        dimension_numbers=(((1,), (1,)), ((), ())),
        preferred_element_type=jnp.float32,
    ).astype(o_ref.dtype)


def _round_up(v, m):
    return ((v + m - 1) // m) * m


def _choose_batch_tile(B):
    """Pick a batch tile: ~8 grid steps, rows padded to a multiple of 8,
    capped at 8192 so the lane-padded double-buffered footprint stays ~16 MiB
    (safe on v7x's 64 MiB VMEM and under the 32 MiB scoped default)."""
    tm = _round_up(pl.cdiv(B, 8), 8)
    tm = max(8, min(8192, tm))
    return tm


def _portfolio_allocation_pallas(x, weight):
    """x: (B, input_dim) @ weight(output_dim, input_dim).T -> (B, output_dim)."""
    B, K = x.shape
    N, K_w = weight.shape
    assert K == K_w, "weight must be (output_dim, input_dim)"

    tm = _choose_batch_tile(B)
    grid = (pl.cdiv(B, tm),)

    itemsize = jnp.dtype(x.dtype).itemsize
    cost = pl.CostEstimate(
        flops=2 * B * K * N,
        bytes_accessed=(B * K + N * K + B * N) * itemsize,
        transcendentals=0,
    )

    return pl.pallas_call(
        _linear_kernel,
        out_shape=jax.ShapeDtypeStruct((B, N), x.dtype),
        grid=grid,
        in_specs=[
            # x streams tile-by-tile over the batch.
            pl.BlockSpec((tm, K), lambda i: (i, 0)),
            # Weight: full-array block, constant index -> stays VMEM-resident.
            pl.BlockSpec((N, K), lambda i: (0, 0)),
        ],
        out_specs=pl.BlockSpec((tm, N), lambda i: (i, 0)),
        compiler_params=pltpu.CompilerParams(
            dimension_semantics=("parallel",),
            vmem_limit_bytes=32 * 1024 * 1024,
        ),
        cost_estimate=cost,
    )(x, weight)


def portfolio_allocation_forward(x, weight, hyper_param=None, *,
                                 min_pallas_batch=1024):
    """Forward pass of Portfolio_Allocation: y = x @ weight.T (no bias)."""
    del hyper_param  # stored on the module but unused in forward
    B, K = x.shape
    N, K_w = weight.shape
    assert K == K_w, "weight must be (output_dim, input_dim)"

    if B < min_pallas_batch:
        # Launch + pipeline overhead dominates a sub-vreg matmul; XLA's fused
        # op is strictly faster at these sizes on all TPU generations.
        return jnp.dot(x, weight.T).astype(x.dtype)

    return _portfolio_allocation_pallas(x, weight)


if __name__ == "__main__":
    input_dim, output_dim = 32, 16
    hyper_param = 0.5  # stored but unused in forward

    key = jax.random.PRNGKey(0)
    kx, kw, kx2 = jax.random.split(key, 3)

    # Deterministic init_weight (same role as the copied-in weight in __init__).
    init_weight = (
        jax.random.normal(kw, (output_dim, input_dim), dtype=jnp.float32) * 0.1
    )

    # 1) Module-consistent tiny demo batch -> dispatches to the XLA fallback.
    batch_small = 8
    x_small = jax.random.normal(kx, (batch_small, input_dim), dtype=jnp.float32)
    y_small = portfolio_allocation_forward(x_small, init_weight, hyper_param)
    jax.block_until_ready(y_small)
    assert y_small.shape == (batch_small, output_dim)
    assert jnp.allclose(y_small, x_small @ init_weight.T, atol=1e-4, rtol=1e-4)

    # 2) Exercise the Pallas kernel itself on a multi-tile batch (8 grid steps).
    batch_pallas = 1024
    x_pallas = jax.random.normal(kx2, (batch_pallas, input_dim), dtype=jnp.float32)
    y_pallas = _portfolio_allocation_pallas(x_pallas, init_weight)
    jax.block_until_ready(y_pallas)
    assert y_pallas.shape == (batch_pallas, output_dim)
    assert jnp.allclose(y_pallas, x_pallas @ init_weight.T, atol=1e-4, rtol=1e-4)

    print("KERNEL_OK")
</pallas_src>

<mosaic_0001>
module attributes {stable_mosaic.version = 11 : i64} {
  func.func @_linear_kernel(%arg0: i32, %arg1: memref<128x32xf32, #tpu.memory_space<vmem>>, %arg2: memref<16x32xf32, #tpu.memory_space<vmem>>, %arg3: memref<128x16xf32, #tpu.memory_space<vmem>>) attributes {dimension_semantics = [#tpu.dimension_semantics<parallel>], iteration_bounds = array<i64: 8>, scalar_prefetch = 0 : i64, scratch_operands = 0 : i64, tpu.core_type = #tpu.core_type<tc>, window_params = [{transform_indices = @transform_0, window_bounds = array<i64: 128, 32>}, {pipeline_mode = #tpu.pipeline_mode<synchronous>, transform_indices = @transform_1, window_bounds = array<i64: 16, 32>}, {transform_indices = @transform_2, window_bounds = array<i64: 128, 16>}]} {
    %c0 = arith.constant 0 : index
    %c0_0 = arith.constant 0 : index
    %0 = vector.load %arg1[%c0, %c0_0] : memref<128x32xf32, #tpu.memory_space<vmem>>, vector<128x32xf32>
    %c0_1 = arith.constant 0 : index
    %c0_2 = arith.constant 0 : index
    %1 = vector.load %arg2[%c0_1, %c0_2] : memref<16x32xf32, #tpu.memory_space<vmem>>, vector<16x32xf32>
    %cst = arith.constant dense<0.000000e+00> : vector<128x16xf32>
    %2 = tpu.matmul %0, %1, %cst {dimension_numbers = #tpu.dot_dimension_numbers<[1], [1], [0], [0], [0, 0, 1, 0], [], []>} : vector<128x32xf32>, vector<16x32xf32>, vector<128x16xf32> -> vector<128x16xf32>
    %c0_3 = arith.constant 0 : index
    %c0_4 = arith.constant 0 : index
    %3 = vector.load %arg3[%c0_3, %c0_4] : memref<128x16xf32, #tpu.memory_space<vmem>>, vector<128x16xf32>
    tpu.vector_store %arg3[%c0_3, %c0_4], %2 {strides = array<i32>} : memref<128x16xf32, #tpu.memory_space<vmem>>, vector<128x16xf32>,
    return
  }
  func.func @transform_0(%arg0: i32) -> (i32, i32) {
    %c0_i32 = arith.constant 0 : i32
    %c0_i32_0 = arith.constant 0 : i32
    return %arg0, %c0_i32 : i32, i32
  }
  func.func @transform_1(%arg0: i32) -> (i32, i32) {
    %c0_i32 = arith.constant 0 : i32
    %c0_i32_0 = arith.constant 0 : i32
    %c0_i32_1 = arith.constant 0 : i32
    return %c0_i32, %c0_i32_0 : i32, i32
  }
  func.func @transform_2(%arg0: i32) -> (i32, i32) {
    %c0_i32 = arith.constant 0 : i32
    %c0_i32_0 = arith.constant 0 : i32
    return %arg0, %c0_i32 : i32, i32
  }
}

</mosaic_0001>

<llo_original>
// kernel: tpu_custom_call.1
$region0: #{tpu_custom_call.1}
  #allocation0 [shape = 'u32[]', space=smem, size = 0x4, offset = 0x4, fixed_abs, tag = 'smem constant byte address 0x4 - core index']
  #allocation1 [shape = 'u32[144,128]{1,0:T(1,128)}', space=vmem, size = 0x12000, scoped, tag = 'internal scratch']
  %s0 = inlined_call_operand.vmem [shape: f32[1024,32], index: 0, kind: input, shape index: {}]
  %s1 = inlined_call_operand.vmem [shape: f32[16,32], index: 1, kind: input, shape index: {}]
  %s2 = inlined_call_operand.vmem [shape: f32[1024,16], index: 2, kind: output, shape index: {}]
  %s3 = sld [smem:[#allocation0]]
  $region41: #{tpu_custom_call.1} parent=0
    _
  %s5 = ssub.s32 1, %s3
  %s6 = scalar_select 0, %s5, %s3
  loop: start=0, step=1, limit=10
  $region2: #{tpu_custom_call.1} parent=0 // loop_pre_header
    _
  $region3: #{tpu_custom_call.1} parent=0 // loop_header
    %s8 = sphi 0, %s12
    %p9 = scmp.ge.s32.totalorder %s8, 10
    %s18 = sphi 0, %s20
    %s21 = sphi 0, %s18
    %s22 = sphi 0, %s21
    %s38 = sphi 0, %s22
    %s42 = sphi 0, %s42
    %s44 = sphi 0, %s42
    %s45 = sphi 0, %s44
    %s59 = sphi 0, %s45
    %s65 = sphi 0, %s67
    %s68 = sphi 0, %s65
    %s69 = sphi 0, %s68
    %s85 = sphi 0, %s69
  $region4: #{tpu_custom_call.1} parent=0 // loop_header_branch
    %11 = sbr.rel (%p9) target = $region8
  $region5: #{tpu_custom_call.1} parent=0 // loop_body
    %s13 = ssub.s32 %s8, 1
    %s14 = ssub.s32 %s8, 2
    %s15 = sadd.s32 %s8, 1
    %s16 = ssub.s32 %s8, %s15
    %p17 = scmp.eq.s32.totalorder %s16, 0
    %s19 = sadd.s32 %s18, 1
    %s20 = scalar_select %p17, %s18, %s19
    %p23 = pneg %p17
    %p24 = scmp.eq.s32.totalorder %s8, 7
    %p25 = por %p23, %p24
    %p26 = scmp.ne.s32.totalorder %s18, %s21
    %p27 = scmp.eq.s32.totalorder %s8, 0
    %p28 = por %p26, %p27
    %p29 = scmp.ne.s32.totalorder %s18, %s21
    %p30 = scmp.eq.s32.totalorder %s13, 7
    %p31 = por %p29, %p30
    %p32 = scmp.ne.s32.totalorder %s21, %s22
    %p33 = scmp.eq.s32.totalorder %s13, 0
    %p34 = por %p32, %p33
    %p35 = scmp.ne.s32.totalorder %s21, %s22
    %p36 = scmp.eq.s32.totalorder %s14, 7
    %p37 = por %p35, %p36
    %p39 = scmp.ne.s32.totalorder %s22, %s38
    %p40 = scmp.eq.s32.totalorder %s14, 0
    %p41 = por %p39, %p40
    %s43 = sadd.s32 %s42, 1
    %p46 = scmp.eq.s32.totalorder %s8, 7
    %p47 = scmp.ne.s32.totalorder %s42, %s44
    %p48 = scmp.eq.s32.totalorder %s8, 0
    %p49 = por %p47, %p48
    %p50 = scmp.ne.s32.totalorder %s42, %s44
    %p51 = scmp.eq.s32.totalorder %s13, 7
    %p52 = por %p50, %p51
    %p53 = scmp.ne.s32.totalorder %s44, %s45
    %p54 = scmp.eq.s32.totalorder %s13, 0
    %p55 = por %p53, %p54
    %p56 = scmp.ne.s32.totalorder %s44, %s45
    %p57 = scmp.eq.s32.totalorder %s14, 7
    %p58 = por %p56, %p57
    %p60 = scmp.ne.s32.totalorder %s45, %s59
    %p61 = scmp.eq.s32.totalorder %s14, 0
    %p62 = por %p60, %p61
    %s63 = ssub.s32 %s8, %s15
    %p64 = scmp.eq.s32.totalorder %s63, 0
    %s66 = sadd.s32 %s65, 1
    %s67 = scalar_select %p64, %s65, %s66
    %p70 = pneg %p64
    %p71 = scmp.eq.s32.totalorder %s8, 7
    %p72 = por %p70, %p71
    %p73 = scmp.ne.s32.totalorder %s65, %s68
    %p74 = scmp.eq.s32.totalorder %s8, 0
    %p75 = por %p73, %p74
    %p76 = scmp.ne.s32.totalorder %s65, %s68
    %p77 = scmp.eq.s32.totalorder %s13, 7
    %p78 = por %p76, %p77
    %p79 = scmp.ne.s32.totalorder %s68, %s69
    %p80 = scmp.eq.s32.totalorder %s13, 0
    %p81 = por %p79, %p80
    %p82 = scmp.ne.s32.totalorder %s68, %s69
    %p83 = scmp.eq.s32.totalorder %s14, 7
    %p84 = por %p82, %p83
    %p86 = scmp.ne.s32.totalorder %s69, %s85
    %p87 = scmp.eq.s32.totalorder %s14, 0
    %p88 = por %p86, %p87
    %p89 = scmp.le.s32.totalorder 1, %s8
    %p90 = scmp.lt.s32.totalorder %s8, 9
    %p91 = pnand %p89, %p90
    %p92 = pneg %p91
    // Predicated region
    $region9: #{tpu_custom_call.1} parent=5 // pred_check
      _
    $region10: #{tpu_custom_call.1} parent=5 // pred_check_branch
      %94 = sbr.rel (%p91) target = $region12
    $region11: #{tpu_custom_call.1} parent=5 // pred_region
      %s95 = ssub.s32 %s8, 1
      // Predicated region
      $region13: #{tpu_custom_call.1} parent=11 // pred_check
        %p96 = pneg %p55
      $region14: #{tpu_custom_call.1} parent=11 // pred_check_branch
        %98 = sbr.rel (%p96) target = $region16
      $region15: #{tpu_custom_call.1} parent=11 // pred_region
        _
      $region16: #{tpu_custom_call.1} parent=11 // pred_fallthru
        _
    $region12: #{tpu_custom_call.1} parent=5 // pred_fallthru
      _
    %p99 = scmp.lt.s32.totalorder %s8, 8
    // Predicated region
    $region17: #{tpu_custom_call.1} parent=5 // pred_check
      %p100 = pneg %p99
    $region18: #{tpu_custom_call.1} parent=5 // pred_check_branch
      %102 = sbr.rel (%p100) target = $region20
    $region19: #{tpu_custom_call.1} parent=5 // pred_region
      // Predicated region
      $region21: #{tpu_custom_call.1} parent=19 // pred_check
        %p103 = pneg %p28
      $region22: #{tpu_custom_call.1} parent=19 // pred_check_branch
        %105 = sbr.rel (%p103) target = $region24
      $region23: #{tpu_custom_call.1} parent=19 // pred_region
        %s106 = smul.u32 16, %s8
        %p107 = scmp.lt.s32.totalorder %s106, 127
        %s108 = scalar_select %p107, %s106, 127
        %s109 = smul.addr %s108, 8
        %s110 = scalar_lea.vmem %s0, %s109
        %s111 = smul.u32 16, %s8
      $region24: #{tpu_custom_call.1} parent=19 // pred_fallthru
        _
    $region20: #{tpu_custom_call.1} parent=5 // pred_fallthru
      _
    %p112 = scmp.le.s32.totalorder 1, %s8
    %p113 = scmp.lt.s32.totalorder %s8, 9
    %p114 = pnand %p112, %p113
    %p115 = pneg %p114
    // Predicated region
    $region25: #{tpu_custom_call.1} parent=5 // pred_check
      _
    $region26: #{tpu_custom_call.1} parent=5 // pred_check_branch
      %117 = sbr.rel (%p114) target = $region28
    $region27: #{tpu_custom_call.1} parent=5 // pred_region
      %s118 = ssub.s32 %s8, 1
      %s119 = smul.u32 16, %s13
      %p120 = scmp.lt.s32.totalorder %s119, 127
      %s121 = scalar_select %p120, %s119, 127
      %s122 = smul.addr %s121, 8
      %s123 = scalar_lea.vmem %s0, %s122
      %p124 = pneg %p34
      %p125 = pneg %p31
      %p126 = pneg %p55
      %p127 = pneg %p52
      %p128 = pneg %p81
      %p129 = pneg %p78
      %s130 = smul.u32 16, %s13
      %p131 = scmp.lt.s32.totalorder %s130, 127
      %s132 = scalar_select %p131, %s130, 127
      %s133 = smul.addr %s132, 8
      %s134 = scalar_lea.vmem %s2, %s133
      %s135 = smul.u32 16, %s13
      %p136 = scmp.lt.s32.totalorder %s135, 127
      %s137 = scalar_select %p136, %s135, 127
      %s138 = smul.addr %s137, 8
      %s139 = scalar_lea.vmem %s0, %s138
      %s140 = smul.u32 16, %s13
      %s141 = smul.u32 16, %s13
      %p142 = scmp.lt.s32.totalorder %s141, 127
      %s143 = scalar_select %p142, %s141, 127
      %s144 = smul.addr %s143, 8
      %s145 = scalar_lea.vmem %s2, %s144
      %s146 = smul.u32 16, %s13
      %v147 = vld [vmem:[%s139] sm:$0xff]
      %v148 = vld [vmem:[%s139 + $0x8] sm:$0xff]
      %v149 = vld [vmem:[%s139 + $0x10] sm:$0xff]
      %v150 = vld [vmem:[%s139 + $0x18] sm:$0xff]
      %v151 = vld [vmem:[%s139 + $0x20] sm:$0xff]
      %v152 = vld [vmem:[%s139 + $0x28] sm:$0xff]
      %v153 = vld [vmem:[%s139 + $0x30] sm:$0xff]
      %v154 = vld [vmem:[%s139 + $0x38] sm:$0xff]
      %v155 = vld [vmem:[%s139 + $0x40] sm:$0xff]
      %v156 = vld [vmem:[%s139 + $0x48] sm:$0xff]
      %v157 = vld [vmem:[%s139 + $0x50] sm:$0xff]
      %v158 = vld [vmem:[%s139 + $0x58] sm:$0xff]
      %v159 = vld [vmem:[%s139 + $0x60] sm:$0xff]
      %v160 = vld [vmem:[%s139 + $0x68] sm:$0xff]
      %v161 = vld [vmem:[%s139 + $0x70] sm:$0xff]
      %v162 = vld [vmem:[%s139 + $0x78] sm:$0xff]
      %v163 = vld [vmem:[%s1] sm:$0xff]
      %v164 = vld [vmem:[%s1 + $0x8] sm:$0xff]
      %vm165 = vcmask 261120
      %v167 = vsel %vm165, %v147, 0
      %v170 = vsel %vm165, %v148, 0
      %v173 = vsel %vm165, %v149, 0
      %v176 = vsel %vm165, %v150, 0
      %v179 = vsel %vm165, %v151, 0
      %v182 = vsel %vm165, %v152, 0
      %v185 = vsel %vm165, %v153, 0
      %v188 = vsel %vm165, %v154, 0
      %v191 = vsel %vm165, %v155, 0
      %v194 = vsel %vm165, %v156, 0
      %v197 = vsel %vm165, %v157, 0
      %v200 = vsel %vm165, %v158, 0
      %v203 = vsel %vm165, %v159, 0
      %v206 = vsel %vm165, %v160, 0
      %v209 = vsel %vm165, %v161, 0
      %v212 = vsel %vm165, %v162, 0
      %v215 = vsel %vm165, %v163, 0
      %v218 = vsel %vm165, %v164, 0
      %220 = vmatprep.subr.mxu0 0.0
      %221 = vmatpush1.xpose.msra.mxu0 %v215
      %222 = vmatprep.subr.mxu0 0.0
      %223 = vmatpush1.xpose.msra.mxu0 %v218
      %224 = vmatprep.subr.mxu0 0.0
      %225 = vmatpush1.xpose.msra.mxu0 0.0
      %226 = vmatprep.subr.mxu0 0.0
      %227 = vmatpush1.xpose.msra.mxu0 0.0
      %228 = vmatprep.subr.mxu0 0.0
      %229 = vmatpush1.xpose.msra.mxu0 0.0
      %230 = vmatprep.subr.mxu0 0.0
      %231 = vmatpush1.xpose.msra.mxu0 0.0
      %232 = vmatprep.subr.mxu0 0.0
      %233 = vmatpush1.xpose.msra.mxu0 0.0
      %234 = vmatprep.subr.mxu0 0.0
      %235 = vmatpush1.xpose.msra.mxu0 0.0
      %236 = vmatprep.subr.mxu0 0.0
      %237 = vmatpush1.xpose.msra.mxu0 0.0
      %238 = vmatprep.subr.mxu0 0.0
      %239 = vmatpush1.xpose.msra.mxu0 0.0
      %240 = vmatprep.subr.mxu0 0.0
      %241 = vmatpush1.xpose.msra.mxu0 0.0
      %242 = vmatprep.subr.mxu0 0.0
      %243 = vmatpush1.xpose.msra.mxu0 0.0
      %244 = vmatprep.subr.mxu0 0.0
      %245 = vmatpush1.xpose.msra.mxu0 0.0
      %246 = vmatprep.subr.mxu0 0.0
      %247 = vmatpush1.xpose.msra.mxu0 0.0
      %248 = vmatprep.subr.mxu0 0.0
      %249 = vmatpush1.xpose.msra.mxu0 0.0
      %250 = vmatprep.subr.mxu0 0.0
      %251 = vmatpush1.xpose.msra.mxu0 0.0
      %252 = vmatprep.subr.mxu0 0.0
      %253 = vmatpush1.xpose.msra.mxu0 0.0
      %254 = vmatprep.subr.mxu0 0.0
      %255 = vmatpush1.xpose.msra.mxu0 0.0
      %256 = vmatprep.subr.mxu0 0.0
      %257 = vmatpush1.xpose.msra.mxu0 0.0
      %258 = vmatprep.subr.mxu0 0.0
      %259 = vmatpush1.xpose.msra.mxu0 0.0
      %260 = vmatprep.subr.mxu0 0.0
      %261 = vmatpush1.xpose.msra.mxu0 0.0
      %262 = vmatprep.subr.mxu0 0.0
      %263 = vmatpush1.xpose.msra.mxu0 0.0
      %264 = vmatprep.subr.mxu0 0.0
      %265 = vmatpush1.xpose.msra.mxu0 0.0
      %266 = vmatprep.subr.mxu0 0.0
      %267 = vmatpush1.xpose.msra.mxu0 0.0
      %268 = vmatprep.subr.mxu0 0.0
      %269 = vmatpush1.xpose.msra.mxu0 0.0
      %270 = vmatprep.subr.mxu0 0.0
      %271 = vmatpush1.xpose.msra.mxu0 0.0
      %272 = vmatprep.subr.mxu0 0.0
      %273 = vmatpush1.xpose.msra.mxu0 0.0
      %274 = vmatprep.subr.mxu0 0.0
      %275 = vmatpush1.xpose.msra.mxu0 0.0
      %276 = vmatprep.subr.mxu0 0.0
      %277 = vmatpush1.xpose.msra.mxu0 0.0
      %278 = vmatprep.subr.mxu0 0.0
      %279 = vmatpush1.xpose.msra.mxu0 0.0
      %280 = vmatprep.subr.mxu0 0.0
      %281 = vmatpush1.xpose.msra.mxu0 0.0
      %282 = vmatprep.subr.mxu0 0.0
      %283 = vmatpush1.xpose.msra.mxu0 0.0
      %284 = vmatprep.mubr.f32.mxu0 0.0
      %285 = vmatmul.mubr.f32.gmra.mrb[0].mxu0 %v167
      %v286 = vpop.f32.mrb[0].mxu0
      %v287 = vadd.f32 0.0, %v286
      %v288 = vpop.f32.mrb[0].mxu0
      %289 = vmatprep.mubr.f32.mxu0 0.0
      %290 = vmatmul.mubr.f32.gmra.mrb[0].mxu0 %v170
      %v291 = vpop.f32.mrb[0].mxu0
      %v292 = vadd.f32 0.0, %v291
      %v293 = vpop.f32.mrb[0].mxu0
      %294 = vmatprep.mubr.f32.mxu0 0.0
      %295 = vmatmul.mubr.f32.gmra.mrb[0].mxu0 %v173
      %v296 = vpop.f32.mrb[0].mxu0
      %v297 = vadd.f32 0.0, %v296
      %v298 = vpop.f32.mrb[0].mxu0
      %299 = vmatprep.mubr.f32.mxu0 0.0
      %300 = vmatmul.mubr.f32.gmra.mrb[0].mxu0 %v176
      %v301 = vpop.f32.mrb[0].mxu0
      %v302 = vadd.f32 0.0, %v301
      %v303 = vpop.f32.mrb[0].mxu0
      %304 = vmatprep.mubr.f32.mxu0 0.0
      %305 = vmatmul.mubr.f32.gmra.mrb[0].mxu0 %v179
      %v306 = vpop.f32.mrb[0].mxu0
      %v307 = vadd.f32 0.0, %v306
      %v308 = vpop.f32.mrb[0].mxu0
      %309 = vmatprep.mubr.f32.mxu0 0.0
      %310 = vmatmul.mubr.f32.gmra.mrb[0].mxu0 %v182
      %v311 = vpop.f32.mrb[0].mxu0
      %v312 = vadd.f32 0.0, %v311
      %v313 = vpop.f32.mrb[0].mxu0
      %314 = vmatprep.mubr.f32.mxu0 0.0
      %315 = vmatmul.mubr.f32.gmra.mrb[0].mxu0 %v185
      %v316 = vpop.f32.mrb[0].mxu0
      %v317 = vadd.f32 0.0, %v316
      %v318 = vpop.f32.mrb[0].mxu0
      %319 = vmatprep.mubr.f32.mxu0 0.0
      %320 = vmatmul.mubr.f32.gmra.mrb[0].mxu0 %v188
      %v321 = vpop.f32.mrb[0].mxu0
      %v322 = vadd.f32 0.0, %v321
      %v323 = vpop.f32.mrb[0].mxu0
      %324 = vmatprep.mubr.f32.mxu0 0.0
      %325 = vmatmul.mubr.f32.gmra.mrb[0].mxu0 %v191
      %v326 = vpop.f32.mrb[0].mxu0
      %v327 = vadd.f32 0.0, %v326
      %v328 = vpop.f32.mrb[0].mxu0
      %329 = vmatprep.mubr.f32.mxu0 0.0
      %330 = vmatmul.mubr.f32.gmra.mrb[0].mxu0 %v194
      %v331 = vpop.f32.mrb[0].mxu0
      %v332 = vadd.f32 0.0, %v331
      %v333 = vpop.f32.mrb[0].mxu0
      %334 = vmatprep.mubr.f32.mxu0 0.0
      %335 = vmatmul.mubr.f32.gmra.mrb[0].mxu0 %v197
      %v336 = vpop.f32.mrb[0].mxu0
      %v337 = vadd.f32 0.0, %v336
      %v338 = vpop.f32.mrb[0].mxu0
      %339 = vmatprep.mubr.f32.mxu0 0.0
      %340 = vmatmul.mubr.f32.gmra.mrb[0].mxu0 %v200
      %v341 = vpop.f32.mrb[0].mxu0
      %v342 = vadd.f32 0.0, %v341
      %v343 = vpop.f32.mrb[0].mxu0
      %344 = vmatprep.mubr.f32.mxu0 0.0
      %345 = vmatmul.mubr.f32.gmra.mrb[0].mxu0 %v203
      %v346 = vpop.f32.mrb[0].mxu0
      %v347 = vadd.f32 0.0, %v346
      %v348 = vpop.f32.mrb[0].mxu0
      %349 = vmatprep.mubr.f32.mxu0 0.0
      %350 = vmatmul.mubr.f32.gmra.mrb[0].mxu0 %v206
      %v351 = vpop.f32.mrb[0].mxu0
      %v352 = vadd.f32 0.0, %v351
      %v353 = vpop.f32.mrb[0].mxu0
      %354 = vmatprep.mubr.f32.mxu0 0.0
      %355 = vmatmul.mubr.f32.gmra.mrb[0].mxu0 %v209
      %v356 = vpop.f32.mrb[0].mxu0
      %v357 = vadd.f32 0.0, %v356
      %v358 = vpop.f32.mrb[0].mxu0
      %359 = vmatprep.mubr.f32.mxu0 0.0
      %360 = vmatmul.mubr.f32.gmra.mrb[0].mxu0 %v212
      %v361 = vpop.f32.mrb[0].mxu0
      %v362 = vadd.f32 0.0, %v361
      %v363 = vpop.f32.mrb[0].mxu0
      %364 = vdwg.mxu0
      %vm365 = vcmask 130048
      %366 = vst.msk [vmem:[%s145] sm:$0xff] %vm365, %v287
      %367 = vst.msk [vmem:[%s145 + $0x8] sm:$0xff] %vm365, %v292
      %368 = vst.msk [vmem:[%s145 + $0x10] sm:$0xff] %vm365, %v297
      %369 = vst.msk [vmem:[%s145 + $0x18] sm:$0xff] %vm365, %v302
      %370 = vst.msk [vmem:[%s145 + $0x20] sm:$0xff] %vm365, %v307
      %371 = vst.msk [vmem:[%s145 + $0x28] sm:$0xff] %vm365, %v312
      %372 = vst.msk [vmem:[%s145 + $0x30] sm:$0xff] %vm365, %v317
      %373 = vst.msk [vmem:[%s145 + $0x38] sm:$0xff] %vm365, %v322
      %374 = vst.msk [vmem:[%s145 + $0x40] sm:$0xff] %vm365, %v327
      %375 = vst.msk [vmem:[%s145 + $0x48] sm:$0xff] %vm365, %v332
      %376 = vst.msk [vmem:[%s145 + $0x50] sm:$0xff] %vm365, %v337
      %377 = vst.msk [vmem:[%s145 + $0x58] sm:$0xff] %vm365, %v342
      %378 = vst.msk [vmem:[%s145 + $0x60] sm:$0xff] %vm365, %v347
      %379 = vst.msk [vmem:[%s145 + $0x68] sm:$0xff] %vm365, %v352
      %380 = vst.msk [vmem:[%s145 + $0x70] sm:$0xff] %vm365, %v357
      %381 = vst.msk [vmem:[%s145 + $0x78] sm:$0xff] %vm365, %v362
      %s382 = smul.u32 16, %s13
      %p383 = scmp.lt.s32.totalorder %s382, 127
      %s384 = scalar_select %p383, %s382, 127
      %s385 = smul.addr %s384, 8
      %s386 = scalar_lea.vmem %s2, %s385
      // Predicated region
      $region29: #{tpu_custom_call.1} parent=27 // pred_check
        %p387 = pneg %p78
      $region30: #{tpu_custom_call.1} parent=27 // pred_check_branch
        %389 = sbr.rel (%p387) target = $region32
      $region31: #{tpu_custom_call.1} parent=27 // pred_region
        %s390 = smul.u32 16, %s13
      $region32: #{tpu_custom_call.1} parent=27 // pred_fallthru
        _
    $region28: #{tpu_custom_call.1} parent=5 // pred_fallthru
      _
    %p391 = scmp.le.s32.totalorder 2, %s8
    // Predicated region
    $region33: #{tpu_custom_call.1} parent=5 // pred_check
      %p392 = pneg %p391
    $region34: #{tpu_custom_call.1} parent=5 // pred_check_branch
      %394 = sbr.rel (%p392) target = $region36
    $region35: #{tpu_custom_call.1} parent=5 // pred_region
      %s395 = ssub.s32 %s8, 2
      // Predicated region
      $region37: #{tpu_custom_call.1} parent=35 // pred_check
        %p396 = pneg %p84
      $region38: #{tpu_custom_call.1} parent=35 // pred_check_branch
        %398 = sbr.rel (%p396) target = $region40
      $region39: #{tpu_custom_call.1} parent=35 // pred_region
        %s399 = smul.u32 16, %s14
        %p400 = scmp.lt.s32.totalorder %s399, 127
        %s401 = scalar_select %p400, %s399, 127
        %s402 = smul.addr %s401, 8
        %s403 = scalar_lea.vmem %s2, %s402
      $region40: #{tpu_custom_call.1} parent=35 // pred_fallthru
        _
    $region36: #{tpu_custom_call.1} parent=5 // pred_fallthru
      _
  $region6: #{tpu_custom_call.1} parent=0 // loop_footer
    %s12 = sadd.s32 1, %s8
  $region7: #{tpu_custom_call.1} parent=0 // loop_footer_branch
    %7 = sbr.rel target = $region3
  $region8: #{tpu_custom_call.1} parent=0 // loop_exit
    _

</llo_original>
